<compile_context>
chip_gen: v5e
topology: v5e:2x2
jax: 0.10.0
libtpu: 0.0.40
codegen_flags: <defaults>
</compile_context>

<pallas_src>
import jax
import jax.numpy as jnp
from jax.experimental import pallas as pl
from jax.experimental.pallas import tpu as pltpu

EPS = 1e-5
LANES = 128


def stats_kernel(p_ref, w_ref, ss_ref):
    # p_ref:  (TM, K)   bf16 im2col patches tile
    # w_ref:  (K, Cpad) bf16 reshaped conv weight
    # ss_ref: (2, Cpad) f32  [row 0: sum(y), row 1: sum(y*y)] accumulated over M
    @pl.when(pl.program_id(0) == 0)
    def _():
        ss_ref[...] = jnp.zeros_like(ss_ref)

    y = jnp.dot(p_ref[...], w_ref[...], preferred_element_type=jnp.float32)
    s1 = jnp.sum(y, axis=0, keepdims=True)
    s2 = jnp.sum(y * y, axis=0, keepdims=True)
    ss_ref[0:1, :] = ss_ref[0:1, :] + s1
    ss_ref[1:2, :] = ss_ref[1:2, :] + s2


def apply_kernel(p_ref, w_ref, aff_ref, o_ref):
    # aff_ref: (2, Cpad) f32 [row 0: scale = gamma*rsqrt(var+eps), row 1: shift]
    # o_ref:   (TM, Cpad) f32 lane-dense output tile
    y = jnp.dot(p_ref[...], w_ref[...], preferred_element_type=jnp.float32)
    scale = aff_ref[0:1, :]
    shift = aff_ref[1:2, :]
    o_ref[...] = jnp.maximum(y * scale + shift, 0.0)


def conv_block_forward(x_nchw, w_conv, b_conv, gamma, beta, *, tm=256):
    """x_nchw: (N, Cin, H, W); w_conv: (Cout, Cin, 3, 3); b_conv/gamma/beta: (Cout,)."""
    del b_conv  # additive per-channel bias is cancelled exactly by BN mean subtraction

    N, Cin, H, W = x_nchw.shape
    Cout = w_conv.shape[0]
    KH = KW = 3
    OH, OW = H - KH + 1, W - KW + 1
    M = N * OH * OW
    K = KH * KW * Cin

    c_pad = ((Cout + LANES - 1) // LANES) * LANES
    m_pad = ((M + tm - 1) // tm) * tm
    n_m = m_pad // tm

    # ---- glue: NCHW -> NHWC, im2col (bf16), pad M so every grid tile is full ----
    x_nhwc = jnp.transpose(x_nchw, (0, 2, 3, 1)).astype(jnp.bfloat16)
    taps = [x_nhwc[:, kh:kh + OH, kw:kw + OW, :]
            for kh in range(KH) for kw in range(KW)]
    patches = jnp.stack(taps, axis=3).reshape(M, K)        # (M, 9*Cin)
    patches = jnp.pad(patches, ((0, m_pad - M), (0, 0)))   # zero rows: no effect on stats

    # conv weight (Cout, Cin, KH, KW) -> (K, Cout) -> lane-pad to (K, Cpad), bf16
    w2d = jnp.transpose(w_conv, (2, 3, 1, 0)).reshape(K, Cout).astype(jnp.bfloat16)
    w2d = jnp.pad(w2d, ((0, 0), (0, c_pad - Cout)))

    # ---- pass 1: per-channel sum / sum-of-squares over all M rows ----
    ss = pl.pallas_call(
        stats_kernel,
        out_shape=jax.ShapeDtypeStruct((2, c_pad), jnp.float32),
        grid=(n_m,),
        in_specs=[
            pl.BlockSpec((tm, K), lambda i: (i, 0)),
            pl.BlockSpec((K, c_pad), lambda i: (0, 0)),
        ],
        out_specs=pl.BlockSpec((2, c_pad), lambda i: (0, 0)),
        compiler_params=pltpu.CompilerParams(dimension_semantics=("arbitrary",)),
    )(patches, w2d)

    # ---- tiny host-side (XLA) BN fold: scale/shift from sums (f32) ----
    inv_m = 1.0 / M  # true row count, padded rows contribute exactly zero
    mean = ss[0] * inv_m
    var = ss[1] * inv_m - mean * mean
    gamma_p = jnp.pad(gamma.astype(jnp.float32), (0, c_pad - Cout))
    beta_p = jnp.pad(beta.astype(jnp.float32), (0, c_pad - Cout))
    scale = gamma_p * jax.lax.rsqrt(var + EPS)
    shift = beta_p - mean * scale
    affine = jnp.stack([scale, shift], axis=0)  # (2, Cpad)

    # ---- pass 2: recompute matmul, apply folded BN + ReLU, lane-dense store ----
    out_flat = pl.pallas_call(
        apply_kernel,
        out_shape=jax.ShapeDtypeStruct((m_pad, c_pad), jnp.float32),
        grid=(n_m,),
        in_specs=[
            pl.BlockSpec((tm, K), lambda i: (i, 0)),
            pl.BlockSpec((K, c_pad), lambda i: (0, 0)),
            pl.BlockSpec((2, c_pad), lambda i: (0, 0)),
        ],
        out_specs=pl.BlockSpec((tm, c_pad), lambda i: (i, 0)),
        compiler_params=pltpu.CompilerParams(dimension_semantics=("parallel",)),
    )(patches, w2d, affine)

    # ---- glue: slice off padding, back to NCHW ----
    out = out_flat[:M, :Cout].reshape(N, OH, OW, Cout)
    return jnp.transpose(out, (0, 3, 1, 2))  # (N, Cout, OH, OW)


def reference_forward(x_nchw, w_conv, b_conv, gamma, beta):
    """Pure-JAX reference (Conv2d + BatchNorm2d(train) + ReLU).

    The conv operands are rounded to bf16 (and back) to match the kernel's
    MXU-native bf16 inputs; accumulation / BN math stays f32.
    """
    xq = x_nchw.astype(jnp.bfloat16).astype(jnp.float32)
    wq = w_conv.astype(jnp.bfloat16).astype(jnp.float32)
    y = jax.lax.conv_general_dilated(
        xq, wq, window_strides=(1, 1), padding="VALID",
        dimension_numbers=("NCHW", "OIHW", "NCHW"),
        precision=jax.lax.Precision.HIGHEST)
    y = y + b_conv[None, :, None, None]  # kept here; cancelled by BN mean subtraction
    mean = jnp.mean(y, axis=(0, 2, 3), keepdims=True)
    var = jnp.mean((y - mean) ** 2, axis=(0, 2, 3), keepdims=True)
    y = (y - mean) * jax.lax.rsqrt(var + EPS)
    y = y * gamma[None, :, None, None] + beta[None, :, None, None]
    return jnp.maximum(y, 0.0)


if __name__ == "__main__":
    key = jax.random.PRNGKey(0)
    N, Cin, H, W = 2, 4, 16, 16
    Cout = 8

    k_x, k_w, k_b = jax.random.split(key, 3)
    x = jax.random.normal(k_x, (N, Cin, H, W), dtype=jnp.float32)

    # Conv2d-style init (uniform(-bound, bound)); BN default weight=1, bias=0.
    fan_in = Cin * 3 * 3
    bound = 1.0 / (fan_in ** 0.5)
    w_conv = jax.random.uniform(k_w, (Cout, Cin, 3, 3), jnp.float32, -bound, bound)
    b_conv = jax.random.uniform(k_b, (Cout,), jnp.float32, -bound, bound)
    gamma = jnp.ones((Cout,), jnp.float32)
    beta = jnp.zeros((Cout,), jnp.float32)

    fwd = jax.jit(conv_block_forward)
    out = jax.block_until_ready(fwd(x, w_conv, b_conv, gamma, beta))

    ref = reference_forward(x, w_conv, b_conv, gamma, beta)
    assert out.shape == (N, Cout, H - 2, W - 2), out.shape
    assert jnp.allclose(out, ref, atol=1e-3, rtol=1e-3), float(jnp.max(jnp.abs(out - ref)))

    print("KERNEL_OK")
</pallas_src>

<mosaic_0001>
module attributes {stable_mosaic.version = 11 : i64} {
  func.func @stats_kernel(%arg0: i32, %arg1: memref<256x36xbf16, #tpu.memory_space<vmem>>, %arg2: memref<36x128xbf16, #tpu.memory_space<vmem>>, %arg3: memref<2x128xf32, #tpu.memory_space<vmem>>) attributes {dimension_semantics = [#tpu.dimension_semantics<arbitrary>], iteration_bounds = array<i64: 2>, scalar_prefetch = 0 : i64, scratch_operands = 0 : i64, tpu.core_type = #tpu.core_type<tc>, window_params = [{transform_indices = @transform_0, window_bounds = array<i64: 256, 36>}, {pipeline_mode = #tpu.pipeline_mode<synchronous>, transform_indices = @transform_1, window_bounds = array<i64: 36, 128>}, {pipeline_mode = #tpu.pipeline_mode<synchronous>, transform_indices = @transform_2, window_bounds = array<i64: 2, 128>}]} {
    %c0_i32 = arith.constant 0 : i32
    %0 = arith.cmpi eq, %arg0, %c0_i32 : i32
    %1 = arith.extui %0 : i1 to i32
    %c0_i32_0 = arith.constant 0 : i32
    %2 = arith.cmpi ne, %1, %c0_i32_0 : i32
    scf.if %2 {
      %cst_13 = arith.constant 0.000000e+00 : f32
      %17 = vector.broadcast %cst_13 : f32 to vector<2x128xf32>
      %c0_14 = arith.constant 0 : index
      %c0_15 = arith.constant 0 : index
      %18 = vector.load %arg3[%c0_14, %c0_15] : memref<2x128xf32, #tpu.memory_space<vmem>>, vector<2x128xf32>
      tpu.vector_store %arg3[%c0_14, %c0_15], %17 {strides = array<i32>} : memref<2x128xf32, #tpu.memory_space<vmem>>, vector<2x128xf32>,
    } else {
    }
    %c0 = arith.constant 0 : index
    %c0_1 = arith.constant 0 : index
    %3 = vector.load %arg1[%c0, %c0_1] : memref<256x36xbf16, #tpu.memory_space<vmem>>, vector<256x36xbf16>
    %c0_2 = arith.constant 0 : index
    %c0_3 = arith.constant 0 : index
    %4 = vector.load %arg2[%c0_2, %c0_3] : memref<36x128xbf16, #tpu.memory_space<vmem>>, vector<36x128xbf16>
    %cst = arith.constant dense<0.000000e+00> : vector<256x128xf32>
    %5 = tpu.matmul %3, %4, %cst {dimension_numbers = #tpu.dot_dimension_numbers<[1], [0], [0], [1], [0, 0, 1, 1], [], []>} : vector<256x36xbf16>, vector<36x128xbf16>, vector<256x128xf32> -> vector<256x128xf32>
    %cst_4 = arith.constant dense<0.000000e+00> : vector<128xf32>
    %6 = vector.multi_reduction <add>, %5, %cst_4 [0] : vector<256x128xf32> to vector<128xf32>
    %7 = vector.shape_cast %6 : vector<128xf32> to vector<1x128xf32>
    %8 = arith.mulf %5, %5 : vector<256x128xf32>
    %cst_5 = arith.constant dense<0.000000e+00> : vector<128xf32>
    %9 = vector.multi_reduction <add>, %8, %cst_5 [0] : vector<256x128xf32> to vector<128xf32>
    %10 = vector.shape_cast %9 : vector<128xf32> to vector<1x128xf32>
    %c0_6 = arith.constant 0 : index
    %c0_7 = arith.constant 0 : index
    %11 = vector.load %arg3[%c0_6, %c0_7] : memref<2x128xf32, #tpu.memory_space<vmem>>, vector<1x128xf32>
    %12 = arith.addf %11, %7 : vector<1x128xf32>
    %c0_8 = arith.constant 0 : index
    %c0_9 = arith.constant 0 : index
    %13 = vector.load %arg3[%c0_8, %c0_9] : memref<2x128xf32, #tpu.memory_space<vmem>>, vector<1x128xf32>
    tpu.vector_store %arg3[%c0_8, %c0_9], %12 {strides = array<i32>} : memref<2x128xf32, #tpu.memory_space<vmem>>, vector<1x128xf32>,
    %c1 = arith.constant 1 : index
    %c0_10 = arith.constant 0 : index
    %14 = vector.load %arg3[%c1, %c0_10] : memref<2x128xf32, #tpu.memory_space<vmem>>, vector<1x128xf32>
    %15 = arith.addf %14, %10 : vector<1x128xf32>
    %c1_11 = arith.constant 1 : index
    %c0_12 = arith.constant 0 : index
    %16 = vector.load %arg3[%c1_11, %c0_12] : memref<2x128xf32, #tpu.memory_space<vmem>>, vector<1x128xf32>
    tpu.vector_store %arg3[%c1_11, %c0_12], %15 {strides = array<i32>} : memref<2x128xf32, #tpu.memory_space<vmem>>, vector<1x128xf32>,
    return
  }
  func.func @transform_0(%arg0: i32) -> (i32, i32) {
    %c0_i32 = arith.constant 0 : i32
    %c0_i32_0 = arith.constant 0 : i32
    return %arg0, %c0_i32 : i32, i32
  }
  func.func @transform_1(%arg0: i32) -> (i32, i32) {
    %c0_i32 = arith.constant 0 : i32
    %c0_i32_0 = arith.constant 0 : i32
    %c0_i32_1 = arith.constant 0 : i32
    return %c0_i32, %c0_i32_0 : i32, i32
  }
  func.func @transform_2(%arg0: i32) -> (i32, i32) {
    %c0_i32 = arith.constant 0 : i32
    %c0_i32_0 = arith.constant 0 : i32
    %c0_i32_1 = arith.constant 0 : i32
    return %c0_i32, %c0_i32_0 : i32, i32
  }
}

module attributes {stable_mosaic.version = 11 : i64} {
  func.func @apply_kernel(%arg0: i32, %arg1: memref<256x36xbf16, #tpu.memory_space<vmem>>, %arg2: memref<36x128xbf16, #tpu.memory_space<vmem>>, %arg3: memref<2x128xf32, #tpu.memory_space<vmem>>, %arg4: memref<256x128xf32, #tpu.memory_space<vmem>>) attributes {dimension_semantics = [#tpu.dimension_semantics<parallel>], iteration_bounds = array<i64: 2>, scalar_prefetch = 0 : i64, scratch_operands = 0 : i64, tpu.core_type = #tpu.core_type<tc>, window_params = [{transform_indices = @transform_0, window_bounds = array<i64: 256, 36>}, {pipeline_mode = #tpu.pipeline_mode<synchronous>, transform_indices = @transform_1, window_bounds = array<i64: 36, 128>}, {pipeline_mode = #tpu.pipeline_mode<synchronous>, transform_indices = @transform_2, window_bounds = array<i64: 2, 128>}, {transform_indices = @transform_3, window_bounds = array<i64: 256, 128>}]} {
    %c0 = arith.constant 0 : index
    %c0_0 = arith.constant 0 : index
    %0 = vector.load %arg1[%c0, %c0_0] : memref<256x36xbf16, #tpu.memory_space<vmem>>, vector<256x36xbf16>
    %c0_1 = arith.constant 0 : index
    %c0_2 = arith.constant 0 : index
    %1 = vector.load %arg2[%c0_1, %c0_2] : memref<36x128xbf16, #tpu.memory_space<vmem>>, vector<36x128xbf16>
    %cst = arith.constant dense<0.000000e+00> : vector<256x128xf32>
    %2 = tpu.matmul %0, %1, %cst {dimension_numbers = #tpu.dot_dimension_numbers<[1], [0], [0], [1], [0, 0, 1, 1], [], []>} : vector<256x36xbf16>, vector<36x128xbf16>, vector<256x128xf32> -> vector<256x128xf32>
    %c0_3 = arith.constant 0 : index
    %c0_4 = arith.constant 0 : index
    %3 = vector.load %arg3[%c0_3, %c0_4] : memref<2x128xf32, #tpu.memory_space<vmem>>, vector<1x128xf32>
    %c1 = arith.constant 1 : index
    %c0_5 = arith.constant 0 : index
    %4 = vector.load %arg3[%c1, %c0_5] : memref<2x128xf32, #tpu.memory_space<vmem>>, vector<1x128xf32>
    %5 = vector.broadcast %3 : vector<1x128xf32> to vector<256x128xf32>
    %6 = arith.mulf %2, %5 : vector<256x128xf32>
    %7 = vector.broadcast %4 : vector<1x128xf32> to vector<256x128xf32>
    %8 = arith.addf %6, %7 : vector<256x128xf32>
    %cst_6 = arith.constant 0.000000e+00 : f32
    %9 = vector.broadcast %cst_6 : f32 to vector<256x128xf32>
    %10 = arith.maximumf %8, %9 : vector<256x128xf32>
    %c0_7 = arith.constant 0 : index
    %c0_8 = arith.constant 0 : index
    %11 = vector.load %arg4[%c0_7, %c0_8] : memref<256x128xf32, #tpu.memory_space<vmem>>, vector<256x128xf32>
    tpu.vector_store %arg4[%c0_7, %c0_8], %10 {strides = array<i32>} : memref<256x128xf32, #tpu.memory_space<vmem>>, vector<256x128xf32>,
    return
  }
  func.func @transform_0(%arg0: i32) -> (i32, i32) {
    %c0_i32 = arith.constant 0 : i32
    %c0_i32_0 = arith.constant 0 : i32
    return %arg0, %c0_i32 : i32, i32
  }
  func.func @transform_1(%arg0: i32) -> (i32, i32) {
    %c0_i32 = arith.constant 0 : i32
    %c0_i32_0 = arith.constant 0 : i32
    %c0_i32_1 = arith.constant 0 : i32
    return %c0_i32, %c0_i32_0 : i32, i32
  }
  func.func @transform_2(%arg0: i32) -> (i32, i32) {
    %c0_i32 = arith.constant 0 : i32
    %c0_i32_0 = arith.constant 0 : i32
    %c0_i32_1 = arith.constant 0 : i32
    return %c0_i32, %c0_i32_0 : i32, i32
  }
  func.func @transform_3(%arg0: i32) -> (i32, i32) {
    %c0_i32 = arith.constant 0 : i32
    %c0_i32_0 = arith.constant 0 : i32
    return %arg0, %c0_i32 : i32, i32
  }
}

</mosaic_0001>

<llo_original>
// kernel: conv_block_forward.2
$region0: #{conv_block_forward.2}
  #allocation0 [shape = 'u32[]', space=smem, size = 0x4, offset = 0x4, fixed_abs, tag = 'smem constant byte address 0x4 - core index']
  #allocation1 [shape = 'u32[72,128]{1,0:T(1,128)}', space=vmem, size = 0x9000, scoped, tag = 'internal scratch']
  %s0 = inlined_call_operand.vmem [shape: bf16[512,36], index: 0, kind: input, shape index: {}]
  %s1 = inlined_call_operand.vmem [shape: bf16[36,128], index: 1, kind: input, shape index: {}]
  %s2 = inlined_call_operand.vmem [shape: f32[2,128], index: 2, kind: output, shape index: {}]
  %s3 = sld [smem:[#allocation0]]
  $region45: #{conv_block_forward.2} parent=0
    _
  %s5 = ssub.s32 1, %s3
  %s6 = scalar_select 0, %s5, %s3
  loop: start=0, step=1, limit=4
  $region2: #{conv_block_forward.2} parent=0 // loop_pre_header
    _
  $region3: #{conv_block_forward.2} parent=0 // loop_header
    %s8 = sphi 0, %s12
    %p9 = scmp.ge.s32.totalorder %s8, 4
    %s18 = sphi 0, %s20
    %s21 = sphi 0, %s18
    %s22 = sphi 0, %s21
    %s38 = sphi 0, %s22
    %s42 = sphi 0, %s42
    %s44 = sphi 0, %s42
    %s45 = sphi 0, %s44
    %s59 = sphi 0, %s45
    %s63 = sphi 0, %s63
    %s65 = sphi 0, %s63
    %s66 = sphi 0, %s65
    %s80 = sphi 0, %s66
  $region4: #{conv_block_forward.2} parent=0 // loop_header_branch
    %11 = sbr.rel (%p9) target = $region8
  $region5: #{conv_block_forward.2} parent=0 // loop_body
    %s13 = ssub.s32 %s8, 1
    %s14 = ssub.s32 %s8, 2
    %s15 = sadd.s32 %s8, 1
    %s16 = ssub.s32 %s8, %s15
    %p17 = scmp.eq.s32.totalorder %s16, 0
    %s19 = sadd.s32 %s18, 1
    %s20 = scalar_select %p17, %s18, %s19
    %p23 = pneg %p17
    %p24 = scmp.eq.s32.totalorder %s8, 1
    %p25 = por %p23, %p24
    %p26 = scmp.ne.s32.totalorder %s18, %s21
    %p27 = scmp.eq.s32.totalorder %s8, 0
    %p28 = por %p26, %p27
    %p29 = scmp.ne.s32.totalorder %s18, %s21
    %p30 = scmp.eq.s32.totalorder %s13, 1
    %p31 = por %p29, %p30
    %p32 = scmp.ne.s32.totalorder %s21, %s22
    %p33 = scmp.eq.s32.totalorder %s13, 0
    %p34 = por %p32, %p33
    %p35 = scmp.ne.s32.totalorder %s21, %s22
    %p36 = scmp.eq.s32.totalorder %s14, 1
    %p37 = por %p35, %p36
    %p39 = scmp.ne.s32.totalorder %s22, %s38
    %p40 = scmp.eq.s32.totalorder %s14, 0
    %p41 = por %p39, %p40
    %s43 = sadd.s32 %s42, 1
    %p46 = scmp.eq.s32.totalorder %s8, 1
    %p47 = scmp.ne.s32.totalorder %s42, %s44
    %p48 = scmp.eq.s32.totalorder %s8, 0
    %p49 = por %p47, %p48
    %p50 = scmp.ne.s32.totalorder %s42, %s44
    %p51 = scmp.eq.s32.totalorder %s13, 1
    %p52 = por %p50, %p51
    %p53 = scmp.ne.s32.totalorder %s44, %s45
    %p54 = scmp.eq.s32.totalorder %s13, 0
    %p55 = por %p53, %p54
    %p56 = scmp.ne.s32.totalorder %s44, %s45
    %p57 = scmp.eq.s32.totalorder %s14, 1
    %p58 = por %p56, %p57
    %p60 = scmp.ne.s32.totalorder %s45, %s59
    %p61 = scmp.eq.s32.totalorder %s14, 0
    %p62 = por %p60, %p61
    %s64 = sadd.s32 %s63, 1
    %p67 = scmp.eq.s32.totalorder %s8, 1
    %p68 = scmp.ne.s32.totalorder %s63, %s65
    %p69 = scmp.eq.s32.totalorder %s8, 0
    %p70 = por %p68, %p69
    %p71 = scmp.ne.s32.totalorder %s63, %s65
    %p72 = scmp.eq.s32.totalorder %s13, 1
    %p73 = por %p71, %p72
    %p74 = scmp.ne.s32.totalorder %s65, %s66
    %p75 = scmp.eq.s32.totalorder %s13, 0
    %p76 = por %p74, %p75
    %p77 = scmp.ne.s32.totalorder %s65, %s66
    %p78 = scmp.eq.s32.totalorder %s14, 1
    %p79 = por %p77, %p78
    %p81 = scmp.ne.s32.totalorder %s66, %s80
    %p82 = scmp.eq.s32.totalorder %s14, 0
    %p83 = por %p81, %p82
    %p84 = scmp.le.s32.totalorder 1, %s8
    %p85 = scmp.lt.s32.totalorder %s8, 3
    %p86 = pnand %p84, %p85
    %p87 = pneg %p86
    // Predicated region
    $region9: #{conv_block_forward.2} parent=5 // pred_check
      _
    $region10: #{conv_block_forward.2} parent=5 // pred_check_branch
      %89 = sbr.rel (%p86) target = $region12
    $region11: #{conv_block_forward.2} parent=5 // pred_region
      %s90 = ssub.s32 %s8, 1
      // Predicated region
      $region13: #{conv_block_forward.2} parent=11 // pred_check
        %p91 = pneg %p55
      $region14: #{conv_block_forward.2} parent=11 // pred_check_branch
        %93 = sbr.rel (%p91) target = $region16
      $region15: #{conv_block_forward.2} parent=11 // pred_region
        _
      $region16: #{conv_block_forward.2} parent=11 // pred_fallthru
        _
    $region12: #{conv_block_forward.2} parent=5 // pred_fallthru
      _
    %p94 = scmp.lt.s32.totalorder %s8, 2
    // Predicated region
    $region17: #{conv_block_forward.2} parent=5 // pred_check
      %p95 = pneg %p94
    $region18: #{conv_block_forward.2} parent=5 // pred_check_branch
      %97 = sbr.rel (%p95) target = $region20
    $region19: #{conv_block_forward.2} parent=5 // pred_region
      // Predicated region
      $region21: #{conv_block_forward.2} parent=19 // pred_check
        %p98 = pneg %p28
      $region22: #{conv_block_forward.2} parent=19 // pred_check_branch
        %100 = sbr.rel (%p98) target = $region24
      $region23: #{conv_block_forward.2} parent=19 // pred_region
        %s101 = smul.u32 32, %s8
        %p102 = scmp.lt.s32.totalorder %s101, 63
        %s103 = scalar_select %p102, %s101, 63
        %s104 = smul.addr %s103, 4
        %s105 = scalar_lea.vmem %s0, %s104
        %s106 = smul.u32 32, %s8
      $region24: #{conv_block_forward.2} parent=19 // pred_fallthru
        _
    $region20: #{conv_block_forward.2} parent=5 // pred_fallthru
      _
    %p107 = scmp.le.s32.totalorder 1, %s8
    %p108 = scmp.lt.s32.totalorder %s8, 3
    %p109 = pnand %p107, %p108
    %p110 = pneg %p109
    // Predicated region
    $region25: #{conv_block_forward.2} parent=5 // pred_check
      _
    $region26: #{conv_block_forward.2} parent=5 // pred_check_branch
      %112 = sbr.rel (%p109) target = $region28
    $region27: #{conv_block_forward.2} parent=5 // pred_region
      %s113 = ssub.s32 %s8, 1
      %s114 = smul.u32 32, %s13
      %p115 = scmp.lt.s32.totalorder %s114, 63
      %s116 = scalar_select %p115, %s114, 63
      %s117 = smul.addr %s116, 4
      %s118 = scalar_lea.vmem %s0, %s117
      %p119 = pneg %p34
      %p120 = pneg %p31
      %p121 = pneg %p55
      %p122 = pneg %p52
      %p123 = pneg %p76
      %p124 = pneg %p73
      %s125 = smul.u32 32, %s13
      %p126 = scmp.lt.s32.totalorder %s125, 63
      %s127 = scalar_select %p126, %s125, 63
      %s128 = smul.addr %s127, 4
      %s129 = scalar_lea.vmem %s0, %s128
      %s130 = smul.u32 32, %s13
      %p132 = scmp.eq.s32.totalorder %s13, 0
      // Predicated region
      $region29: #{conv_block_forward.2} parent=27 // pred_check
        %p133 = pneg %p132
      $region30: #{conv_block_forward.2} parent=27 // pred_check_branch
        %135 = sbr.rel (%p133) target = $region32
      $region31: #{conv_block_forward.2} parent=27 // pred_region
        %136 = vst [vmem:[%s2] sm:$0x3] 0.0
      $region32: #{conv_block_forward.2} parent=27 // pred_fallthru
        _
      %v137 = vld [vmem:[%s129] sm:$0xf]
      %v138 = vld [vmem:[%s129 + $0x4] sm:$0xf]
      %v139 = vld [vmem:[%s129 + $0x8] sm:$0xf]
      %v140 = vld [vmem:[%s129 + $0xc] sm:$0xf]
      %v141 = vld [vmem:[%s129 + $0x10] sm:$0xf]
      %v142 = vld [vmem:[%s129 + $0x14] sm:$0xf]
      %v143 = vld [vmem:[%s129 + $0x18] sm:$0xf]
      %v144 = vld [vmem:[%s129 + $0x1c] sm:$0xf]
      %v145 = vld [vmem:[%s129 + $0x20] sm:$0xf]
      %v146 = vld [vmem:[%s129 + $0x24] sm:$0xf]
      %v147 = vld [vmem:[%s129 + $0x28] sm:$0xf]
      %v148 = vld [vmem:[%s129 + $0x2c] sm:$0xf]
      %v149 = vld [vmem:[%s129 + $0x30] sm:$0xf]
      %v150 = vld [vmem:[%s129 + $0x34] sm:$0xf]
      %v151 = vld [vmem:[%s129 + $0x38] sm:$0xf]
      %v152 = vld [vmem:[%s129 + $0x3c] sm:$0xf]
      %v153 = vld [vmem:[%s129 + $0x40] sm:$0xf]
      %v154 = vld [vmem:[%s129 + $0x44] sm:$0xf]
      %v155 = vld [vmem:[%s129 + $0x48] sm:$0xf]
      %v156 = vld [vmem:[%s129 + $0x4c] sm:$0xf]
      %v157 = vld [vmem:[%s129 + $0x50] sm:$0xf]
      %v158 = vld [vmem:[%s129 + $0x54] sm:$0xf]
      %v159 = vld [vmem:[%s129 + $0x58] sm:$0xf]
      %v160 = vld [vmem:[%s129 + $0x5c] sm:$0xf]
      %v161 = vld [vmem:[%s129 + $0x60] sm:$0xf]
      %v162 = vld [vmem:[%s129 + $0x64] sm:$0xf]
      %v163 = vld [vmem:[%s129 + $0x68] sm:$0xf]
      %v164 = vld [vmem:[%s129 + $0x6c] sm:$0xf]
      %v165 = vld [vmem:[%s129 + $0x70] sm:$0xf]
      %v166 = vld [vmem:[%s129 + $0x74] sm:$0xf]
      %v167 = vld [vmem:[%s129 + $0x78] sm:$0xf]
      %v168 = vld [vmem:[%s129 + $0x7c] sm:$0xf]
      %v169 = vld [vmem:[%s1] sm:$0xf]
      %v170 = vld [vmem:[%s1 + $0x4] sm:$0xf]
      %v171 = vld [vmem:[%s1 + $0x8] sm:$0xf]
      %v172 = vld [vmem:[%s1 + $0xc] sm:$0xf]
      %v173 = vld [vmem:[%s1 + $0x10] sm:$0x3]
      %v206 = vunpack.c.l.b16 %v137
      %v207 = vunpack.c.l.b16 %v138
      %v208 = vunpack.c.l.b16 %v139
      %v209 = vunpack.c.l.b16 %v140
      %v210 = vunpack.c.l.b16 %v141
      %v211 = vunpack.c.l.b16 %v142
      %v212 = vunpack.c.l.b16 %v143
      %v213 = vunpack.c.l.b16 %v144
      %v214 = vunpack.c.l.b16 %v145
      %v215 = vunpack.c.l.b16 %v146
      %v216 = vunpack.c.l.b16 %v147
      %v217 = vunpack.c.l.b16 %v148
      %v218 = vunpack.c.l.b16 %v149
      %v219 = vunpack.c.l.b16 %v150
      %v220 = vunpack.c.l.b16 %v151
      %v221 = vunpack.c.l.b16 %v152
      %v222 = vunpack.c.l.b16 %v153
      %v223 = vunpack.c.l.b16 %v154
      %v224 = vunpack.c.l.b16 %v155
      %v225 = vunpack.c.l.b16 %v156
      %v226 = vunpack.c.l.b16 %v157
      %v227 = vunpack.c.l.b16 %v158
      %v228 = vunpack.c.l.b16 %v159
      %v229 = vunpack.c.l.b16 %v160
      %v230 = vunpack.c.l.b16 %v161
      %v231 = vunpack.c.l.b16 %v162
      %v232 = vunpack.c.l.b16 %v163
      %v233 = vunpack.c.l.b16 %v164
      %v234 = vunpack.c.l.b16 %v165
      %v235 = vunpack.c.l.b16 %v166
      %v236 = vunpack.c.l.b16 %v167
      %v237 = vunpack.c.l.b16 %v168
      %v238 = vpack.c.b16 %v207, %v206
      %v239 = vpack.c.b16 %v209, %v208
      %v240 = vpack.c.b16 %v211, %v210
      %v241 = vpack.c.b16 %v213, %v212
      %v242 = vpack.c.b16 %v215, %v214
      %v243 = vpack.c.b16 %v217, %v216
      %v244 = vpack.c.b16 %v219, %v218
      %v245 = vpack.c.b16 %v221, %v220
      %v246 = vpack.c.b16 %v223, %v222
      %v247 = vpack.c.b16 %v225, %v224
      %v248 = vpack.c.b16 %v227, %v226
      %v249 = vpack.c.b16 %v229, %v228
      %v250 = vpack.c.b16 %v231, %v230
      %v251 = vpack.c.b16 %v233, %v232
      %v252 = vpack.c.b16 %v235, %v234
      %v253 = vpack.c.b16 %v237, %v236
      %v259 = vunpack.c.l.b16 %v169
      %v260 = vunpack.c.l.b16 %v170
      %v261 = vunpack.c.l.b16 %v171
      %v262 = vunpack.c.l.b16 %v172
      %v263 = vunpack.c.l.b16 %v173
      %v264 = vpack.c.b16 %v260, %v259
      %v265 = vpack.c.b16 %v262, %v261
      %v266 = vpack.c.b16 %v263, %v263
      %vm269 = vcmask 293888
      %v271 = vsel %vm269, %v238, 0
      %v274 = vsel %vm269, %v239, 0
      %v277 = vsel %vm269, %v240, 0
      %v280 = vsel %vm269, %v241, 0
      %v283 = vsel %vm269, %v242, 0
      %v286 = vsel %vm269, %v243, 0
      %v289 = vsel %vm269, %v244, 0
      %v292 = vsel %vm269, %v245, 0
      %v295 = vsel %vm269, %v246, 0
      %v298 = vsel %vm269, %v247, 0
      %v301 = vsel %vm269, %v248, 0
      %v304 = vsel %vm269, %v249, 0
      %v307 = vsel %vm269, %v250, 0
      %v310 = vsel %vm269, %v251, 0
      %v313 = vsel %vm269, %v252, 0
      %v316 = vsel %vm269, %v253, 0
      %vm318 = vcmask 1041408
      %v320 = vsel %vm318, %v266, 0
      %322 = vmatpush.bf16.msra.mxu0 0
      %323 = vmatpush.bf16.msra.mxu0 0
      %324 = vmatpush.bf16.msra.mxu0 0
      %325 = vmatpush.bf16.msra.mxu0 0
      %326 = vmatpush.bf16.msra.mxu0 0
      %327 = vmatpush.bf16.msra.mxu0 %v320
      %328 = vmatpush.bf16.msra.mxu0 %v265
      %329 = vmatpush.bf16.msra.mxu0 %v264
      %330 = vmatmul.bf16.gmra.mxu0 %v271
      %v331 = vpop.f32.mrf.mxu0
      %v332 = vadd.f32 0.0, %v331
      %v333 = vpop.f32.mrf.mxu0
      %v334 = vadd.f32 0.0, %v333
      %335 = vmatmul.bf16.gmra.mxu0 %v274
      %v336 = vpop.f32.mrf.mxu0
      %v337 = vadd.f32 0.0, %v336
      %v338 = vpop.f32.mrf.mxu0
      %v339 = vadd.f32 0.0, %v338
      %340 = vmatmul.bf16.gmra.mxu0 %v277
      %v341 = vpop.f32.mrf.mxu0
      %v342 = vadd.f32 0.0, %v341
      %v343 = vpop.f32.mrf.mxu0
      %v344 = vadd.f32 0.0, %v343
      %345 = vmatmul.bf16.gmra.mxu0 %v280
      %v346 = vpop.f32.mrf.mxu0
      %v347 = vadd.f32 0.0, %v346
      %v348 = vpop.f32.mrf.mxu0
      %v349 = vadd.f32 0.0, %v348
      %350 = vmatmul.bf16.gmra.mxu0 %v283
      %v351 = vpop.f32.mrf.mxu0
      %v352 = vadd.f32 0.0, %v351
      %v353 = vpop.f32.mrf.mxu0
      %v354 = vadd.f32 0.0, %v353
      %355 = vmatmul.bf16.gmra.mxu0 %v286
      %v356 = vpop.f32.mrf.mxu0
      %v357 = vadd.f32 0.0, %v356
      %v358 = vpop.f32.mrf.mxu0
      %v359 = vadd.f32 0.0, %v358
      %360 = vmatmul.bf16.gmra.mxu0 %v289
      %v361 = vpop.f32.mrf.mxu0
      %v362 = vadd.f32 0.0, %v361
      %v363 = vpop.f32.mrf.mxu0
      %v364 = vadd.f32 0.0, %v363
      %365 = vmatmul.bf16.gmra.mxu0 %v292
      %v366 = vpop.f32.mrf.mxu0
      %v367 = vadd.f32 0.0, %v366
      %v368 = vpop.f32.mrf.mxu0
      %v369 = vadd.f32 0.0, %v368
      %370 = vmatmul.bf16.gmra.mxu0 %v295
      %v371 = vpop.f32.mrf.mxu0
      %v372 = vadd.f32 0.0, %v371
      %v373 = vpop.f32.mrf.mxu0
      %v374 = vadd.f32 0.0, %v373
      %375 = vmatmul.bf16.gmra.mxu0 %v298
      %v376 = vpop.f32.mrf.mxu0
      %v377 = vadd.f32 0.0, %v376
      %v378 = vpop.f32.mrf.mxu0
      %v379 = vadd.f32 0.0, %v378
      %380 = vmatmul.bf16.gmra.mxu0 %v301
      %v381 = vpop.f32.mrf.mxu0
      %v382 = vadd.f32 0.0, %v381
      %v383 = vpop.f32.mrf.mxu0
      %v384 = vadd.f32 0.0, %v383
      %385 = vmatmul.bf16.gmra.mxu0 %v304
      %v386 = vpop.f32.mrf.mxu0
      %v387 = vadd.f32 0.0, %v386
      %v388 = vpop.f32.mrf.mxu0
      %v389 = vadd.f32 0.0, %v388
      %390 = vmatmul.bf16.gmra.mxu0 %v307
      %v391 = vpop.f32.mrf.mxu0
      %v392 = vadd.f32 0.0, %v391
      %v393 = vpop.f32.mrf.mxu0
      %v394 = vadd.f32 0.0, %v393
      %395 = vmatmul.bf16.gmra.mxu0 %v310
      %v396 = vpop.f32.mrf.mxu0
      %v397 = vadd.f32 0.0, %v396
      %v398 = vpop.f32.mrf.mxu0
      %v399 = vadd.f32 0.0, %v398
      %400 = vmatmul.bf16.gmra.mxu0 %v313
      %v401 = vpop.f32.mrf.mxu0
      %v402 = vadd.f32 0.0, %v401
      %v403 = vpop.f32.mrf.mxu0
      %v404 = vadd.f32 0.0, %v403
      %405 = vmatmul.bf16.gmra.mxu0 %v316
      %v406 = vpop.f32.mrf.mxu0
      %v407 = vadd.f32 0.0, %v406
      %v408 = vpop.f32.mrf.mxu0
      %v409 = vadd.f32 0.0, %v408
      %410 = vdwg.mxu0
      %v411 = vadd.f32 %v332, %v334
      %v412 = vadd.f32 %v411, %v337
      %v413 = vadd.f32 %v412, %v339
      %v414 = vadd.f32 %v413, %v342
      %v415 = vadd.f32 %v414, %v344
      %v416 = vadd.f32 %v415, %v347
      %v417 = vadd.f32 %v416, %v349
      %v418 = vadd.f32 %v417, %v352
      %v419 = vadd.f32 %v418, %v354
      %v420 = vadd.f32 %v419, %v357
      %v421 = vadd.f32 %v420, %v359
      %v422 = vadd.f32 %v421, %v362
      %v423 = vadd.f32 %v422, %v364
      %v424 = vadd.f32 %v423, %v367
      %v425 = vadd.f32 %v424, %v369
      %v426 = vadd.f32 %v425, %v372
      %v427 = vadd.f32 %v426, %v374
      %v428 = vadd.f32 %v427, %v377
      %v429 = vadd.f32 %v428, %v379
      %v430 = vadd.f32 %v429, %v382
      %v431 = vadd.f32 %v430, %v384
      %v432 = vadd.f32 %v431, %v387
      %v433 = vadd.f32 %v432, %v389
      %v434 = vadd.f32 %v433, %v392
      %v435 = vadd.f32 %v434, %v394
      %v436 = vadd.f32 %v435, %v397
      %v437 = vadd.f32 %v436, %v399
      %v438 = vadd.f32 %v437, %v402
      %v439 = vadd.f32 %v438, %v404
      %v440 = vadd.f32 %v439, %v407
      %v441 = vadd.f32 %v440, %v409
      %v442 = vrot.slane %v441, 4
      %v443 = vadd.f32 %v441, %v442
      %v444 = vrot.slane %v443, 2
      %v445 = vadd.f32 %v443, %v444
      %v446 = vrot.slane %v445, 1
      %v447 = vadd.f32 %v445, %v446
      %v448 = vmul.f32 %v332, %v332
      %v449 = vmul.f32 %v334, %v334
      %v450 = vmul.f32 %v337, %v337
      %v451 = vmul.f32 %v339, %v339
      %v452 = vmul.f32 %v342, %v342
      %v453 = vmul.f32 %v344, %v344
      %v454 = vmul.f32 %v347, %v347
      %v455 = vmul.f32 %v349, %v349
      %v456 = vmul.f32 %v352, %v352
      %v457 = vmul.f32 %v354, %v354
      %v458 = vmul.f32 %v357, %v357
      %v459 = vmul.f32 %v359, %v359
      %v460 = vmul.f32 %v362, %v362
      %v461 = vmul.f32 %v364, %v364
      %v462 = vmul.f32 %v367, %v367
      %v463 = vmul.f32 %v369, %v369
      %v464 = vmul.f32 %v372, %v372
      %v465 = vmul.f32 %v374, %v374
      %v466 = vmul.f32 %v377, %v377
      %v467 = vmul.f32 %v379, %v379
      %v468 = vmul.f32 %v382, %v382
      %v469 = vmul.f32 %v384, %v384
      %v470 = vmul.f32 %v387, %v387
      %v471 = vmul.f32 %v389, %v389
      %v472 = vmul.f32 %v392, %v392
      %v473 = vmul.f32 %v394, %v394
      %v474 = vmul.f32 %v397, %v397
      %v475 = vmul.f32 %v399, %v399
      %v476 = vmul.f32 %v402, %v402
      %v477 = vmul.f32 %v404, %v404
      %v478 = vmul.f32 %v407, %v407
      %v479 = vmul.f32 %v409, %v409
      %v480 = vadd.f32 %v448, %v449
      %v481 = vadd.f32 %v480, %v450
      %v482 = vadd.f32 %v481, %v451
      %v483 = vadd.f32 %v482, %v452
      %v484 = vadd.f32 %v483, %v453
      %v485 = vadd.f32 %v484, %v454
      %v486 = vadd.f32 %v485, %v455
      %v487 = vadd.f32 %v486, %v456
      %v488 = vadd.f32 %v487, %v457
      %v489 = vadd.f32 %v488, %v458
      %v490 = vadd.f32 %v489, %v459
      %v491 = vadd.f32 %v490, %v460
      %v492 = vadd.f32 %v491, %v461
      %v493 = vadd.f32 %v492, %v462
      %v494 = vadd.f32 %v493, %v463
      %v495 = vadd.f32 %v494, %v464
      %v496 = vadd.f32 %v495, %v465
      %v497 = vadd.f32 %v496, %v466
      %v498 = vadd.f32 %v497, %v467
      %v499 = vadd.f32 %v498, %v468
      %v500 = vadd.f32 %v499, %v469
      %v501 = vadd.f32 %v500, %v470
      %v502 = vadd.f32 %v501, %v471
      %v503 = vadd.f32 %v502, %v472
      %v504 = vadd.f32 %v503, %v473
      %v505 = vadd.f32 %v504, %v474
      %v506 = vadd.f32 %v505, %v475
      %v507 = vadd.f32 %v506, %v476
      %v508 = vadd.f32 %v507, %v477
      %v509 = vadd.f32 %v508, %v478
      %v510 = vadd.f32 %v509, %v479
      %v511 = vrot.slane %v510, 4
      %v512 = vadd.f32 %v510, %v511
      %v513 = vrot.slane %v512, 2
      %v514 = vadd.f32 %v512, %v513
      %v515 = vrot.slane %v514, 1
      %v516 = vadd.f32 %v514, %v515
      %v517 = vld [vmem:[%s2] sm:$0x1]
      %v518 = vadd.f32 %v517, %v447
      %519 = vst [vmem:[%s2] sm:$0x1] %v518
      %v520 = vld [vmem:[%s2 + $0x1] sm:$0x1]
      %v521 = vadd.f32 %v520, %v516
      %522 = vst [vmem:[%s2 + $0x1] sm:$0x1] %v521
      // Predicated region
      $region33: #{conv_block_forward.2} parent=27 // pred_check
        %p523 = pneg %p73
      $region34: #{conv_block_forward.2} parent=27 // pred_check_branch
        %525 = sbr.rel (%p523) target = $region36
      $region35: #{conv_block_forward.2} parent=27 // pred_region
        _
      $region36: #{conv_block_forward.2} parent=27 // pred_fallthru
        _
      // Predicated region
      $region37: #{conv_block_forward.2} parent=27 // pred_check
        %p526 = pneg %p73
      $region38: #{conv_block_forward.2} parent=27 // pred_check_branch
        %528 = sbr.rel (%p526) target = $region40
      $region39: #{conv_block_forward.2} parent=27 // pred_region
        _
      $region40: #{conv_block_forward.2} parent=27 // pred_fallthru
        _
    $region28: #{conv_block_forward.2} parent=5 // pred_fallthru
      _
    %p529 = scmp.le.s32.totalorder 2, %s8
    // Predicated region
    $region41: #{conv_block_forward.2} parent=5 // pred_check
      %p530 = pneg %p529
    $region42: #{conv_block_forward.2} parent=5 // pred_check_branch
      %532 = sbr.rel (%p530) target = $region44
    $region43: #{conv_block_forward.2} parent=5 // pred_region
      %s533 = ssub.s32 %s8, 2
    $region44: #{conv_block_forward.2} parent=5 // pred_fallthru
      _
  $region6: #{conv_block_forward.2} parent=0 // loop_footer
    %s12 = sadd.s32 1, %s8
  $region7: #{conv_block_forward.2} parent=0 // loop_footer_branch
    %7 = sbr.rel target = $region3
  $region8: #{conv_block_forward.2} parent=0 // loop_exit
    _

// kernel: conv_block_forward.3
$region0: #{conv_block_forward.3}
  #allocation0 [shape = 'u32[]', space=smem, size = 0x4, offset = 0x4, fixed_abs, tag = 'smem constant byte address 0x4 - core index']
  #allocation1 [shape = 'u32[72,128]{1,0:T(1,128)}', space=vmem, size = 0x9000, scoped, tag = 'internal scratch']
  %s0 = inlined_call_operand.vmem [shape: bf16[512,36], index: 0, kind: input, shape index: {}]
  %s1 = inlined_call_operand.vmem [shape: bf16[36,128], index: 1, kind: input, shape index: {}]
  %s2 = inlined_call_operand.vmem [shape: f32[2,128], index: 2, kind: input, shape index: {}]
  %s3 = inlined_call_operand.vmem [shape: f32[512,128], index: 3, kind: output, shape index: {}]
  %s4 = sld [smem:[#allocation0]]
  $region45: #{conv_block_forward.3} parent=0
    _
  %s6 = ssub.s32 1, %s4
  %s7 = scalar_select 0, %s6, %s4
  loop: start=0, step=1, limit=4
  $region2: #{conv_block_forward.3} parent=0 // loop_pre_header
    _
  $region3: #{conv_block_forward.3} parent=0 // loop_header
    %s9 = sphi 0, %s13
    %p10 = scmp.ge.s32.totalorder %s9, 4
    %s19 = sphi 0, %s21
    %s22 = sphi 0, %s19
    %s23 = sphi 0, %s22
    %s39 = sphi 0, %s23
    %s43 = sphi 0, %s43
    %s45 = sphi 0, %s43
    %s46 = sphi 0, %s45
    %s60 = sphi 0, %s46
    %s64 = sphi 0, %s64
    %s66 = sphi 0, %s64
    %s67 = sphi 0, %s66
    %s81 = sphi 0, %s67
    %s87 = sphi 0, %s89
    %s90 = sphi 0, %s87
    %s91 = sphi 0, %s90
    %s107 = sphi 0, %s91
  $region4: #{conv_block_forward.3} parent=0 // loop_header_branch
    %12 = sbr.rel (%p10) target = $region8
  $region5: #{conv_block_forward.3} parent=0 // loop_body
    %s14 = ssub.s32 %s9, 1
    %s15 = ssub.s32 %s9, 2
    %s16 = sadd.s32 %s9, 1
    %s17 = ssub.s32 %s9, %s16
    %p18 = scmp.eq.s32.totalorder %s17, 0
    %s20 = sadd.s32 %s19, 1
    %s21 = scalar_select %p18, %s19, %s20
    %p24 = pneg %p18
    %p25 = scmp.eq.s32.totalorder %s9, 1
    %p26 = por %p24, %p25
    %p27 = scmp.ne.s32.totalorder %s19, %s22
    %p28 = scmp.eq.s32.totalorder %s9, 0
    %p29 = por %p27, %p28
    %p30 = scmp.ne.s32.totalorder %s19, %s22
    %p31 = scmp.eq.s32.totalorder %s14, 1
    %p32 = por %p30, %p31
    %p33 = scmp.ne.s32.totalorder %s22, %s23
    %p34 = scmp.eq.s32.totalorder %s14, 0
    %p35 = por %p33, %p34
    %p36 = scmp.ne.s32.totalorder %s22, %s23
    %p37 = scmp.eq.s32.totalorder %s15, 1
    %p38 = por %p36, %p37
    %p40 = scmp.ne.s32.totalorder %s23, %s39
    %p41 = scmp.eq.s32.totalorder %s15, 0
    %p42 = por %p40, %p41
    %s44 = sadd.s32 %s43, 1
    %p47 = scmp.eq.s32.totalorder %s9, 1
    %p48 = scmp.ne.s32.totalorder %s43, %s45
    %p49 = scmp.eq.s32.totalorder %s9, 0
    %p50 = por %p48, %p49
    %p51 = scmp.ne.s32.totalorder %s43, %s45
    %p52 = scmp.eq.s32.totalorder %s14, 1
    %p53 = por %p51, %p52
    %p54 = scmp.ne.s32.totalorder %s45, %s46
    %p55 = scmp.eq.s32.totalorder %s14, 0
    %p56 = por %p54, %p55
    %p57 = scmp.ne.s32.totalorder %s45, %s46
    %p58 = scmp.eq.s32.totalorder %s15, 1
    %p59 = por %p57, %p58
    %p61 = scmp.ne.s32.totalorder %s46, %s60
    %p62 = scmp.eq.s32.totalorder %s15, 0
    %p63 = por %p61, %p62
    %s65 = sadd.s32 %s64, 1
    %p68 = scmp.eq.s32.totalorder %s9, 1
    %p69 = scmp.ne.s32.totalorder %s64, %s66
    %p70 = scmp.eq.s32.totalorder %s9, 0
    %p71 = por %p69, %p70
    %p72 = scmp.ne.s32.totalorder %s64, %s66
    %p73 = scmp.eq.s32.totalorder %s14, 1
    %p74 = por %p72, %p73
    %p75 = scmp.ne.s32.totalorder %s66, %s67
    %p76 = scmp.eq.s32.totalorder %s14, 0
    %p77 = por %p75, %p76
    %p78 = scmp.ne.s32.totalorder %s66, %s67
    %p79 = scmp.eq.s32.totalorder %s15, 1
    %p80 = por %p78, %p79
    %p82 = scmp.ne.s32.totalorder %s67, %s81
    %p83 = scmp.eq.s32.totalorder %s15, 0
    %p84 = por %p82, %p83
    %s85 = ssub.s32 %s9, %s16
    %p86 = scmp.eq.s32.totalorder %s85, 0
    %s88 = sadd.s32 %s87, 1
    %s89 = scalar_select %p86, %s87, %s88
    %p92 = pneg %p86
    %p93 = scmp.eq.s32.totalorder %s9, 1
    %p94 = por %p92, %p93
    %p95 = scmp.ne.s32.totalorder %s87, %s90
    %p96 = scmp.eq.s32.totalorder %s9, 0
    %p97 = por %p95, %p96
    %p98 = scmp.ne.s32.totalorder %s87, %s90
    %p99 = scmp.eq.s32.totalorder %s14, 1
    %p100 = por %p98, %p99
    %p101 = scmp.ne.s32.totalorder %s90, %s91
    %p102 = scmp.eq.s32.totalorder %s14, 0
    %p103 = por %p101, %p102
    %p104 = scmp.ne.s32.totalorder %s90, %s91
    %p105 = scmp.eq.s32.totalorder %s15, 1
    %p106 = por %p104, %p105
    %p108 = scmp.ne.s32.totalorder %s91, %s107
    %p109 = scmp.eq.s32.totalorder %s15, 0
    %p110 = por %p108, %p109
    %p111 = scmp.le.s32.totalorder 1, %s9
    %p112 = scmp.lt.s32.totalorder %s9, 3
    %p113 = pnand %p111, %p112
    %p114 = pneg %p113
    // Predicated region
    $region9: #{conv_block_forward.3} parent=5 // pred_check
      _
    $region10: #{conv_block_forward.3} parent=5 // pred_check_branch
      %116 = sbr.rel (%p113) target = $region12
    $region11: #{conv_block_forward.3} parent=5 // pred_region
      %s117 = ssub.s32 %s9, 1
      // Predicated region
      $region13: #{conv_block_forward.3} parent=11 // pred_check
        %p118 = pneg %p56
      $region14: #{conv_block_forward.3} parent=11 // pred_check_branch
        %120 = sbr.rel (%p118) target = $region16
      $region15: #{conv_block_forward.3} parent=11 // pred_region
        _
      $region16: #{conv_block_forward.3} parent=11 // pred_fallthru
        _
      // Predicated region
      $region17: #{conv_block_forward.3} parent=11 // pred_check
        %p121 = pneg %p77
      $region18: #{conv_block_forward.3} parent=11 // pred_check_branch
        %123 = sbr.rel (%p121) target = $region20
      $region19: #{conv_block_forward.3} parent=11 // pred_region
        _
      $region20: #{conv_block_forward.3} parent=11 // pred_fallthru
        _
    $region12: #{conv_block_forward.3} parent=5 // pred_fallthru
      _
    %p124 = scmp.lt.s32.totalorder %s9, 2
    // Predicated region
    $region21: #{conv_block_forward.3} parent=5 // pred_check
      %p125 = pneg %p124
    $region22: #{conv_block_forward.3} parent=5 // pred_check_branch
      %127 = sbr.rel (%p125) target = $region24
    $region23: #{conv_block_forward.3} parent=5 // pred_region
      // Predicated region
      $region25: #{conv_block_forward.3} parent=23 // pred_check
        %p128 = pneg %p29
      $region26: #{conv_block_forward.3} parent=23 // pred_check_branch
        %130 = sbr.rel (%p128) target = $region28
      $region27: #{conv_block_forward.3} parent=23 // pred_region
        %s131 = smul.u32 32, %s9
        %p132 = scmp.lt.s32.totalorder %s131, 63
        %s133 = scalar_select %p132, %s131, 63
        %s134 = smul.addr %s133, 4
        %s135 = scalar_lea.vmem %s0, %s134
        %s136 = smul.u32 32, %s9
      $region28: #{conv_block_forward.3} parent=23 // pred_fallthru
        _
    $region24: #{conv_block_forward.3} parent=5 // pred_fallthru
      _
    %p137 = scmp.le.s32.totalorder 1, %s9
    %p138 = scmp.lt.s32.totalorder %s9, 3
    %p139 = pnand %p137, %p138
    %p140 = pneg %p139
    // Predicated region
    $region29: #{conv_block_forward.3} parent=5 // pred_check
      _
    $region30: #{conv_block_forward.3} parent=5 // pred_check_branch
      %142 = sbr.rel (%p139) target = $region32
    $region31: #{conv_block_forward.3} parent=5 // pred_region
      %s143 = ssub.s32 %s9, 1
      %s144 = smul.u32 32, %s14
      %p145 = scmp.lt.s32.totalorder %s144, 63
      %s146 = scalar_select %p145, %s144, 63
      %s147 = smul.addr %s146, 4
      %s148 = scalar_lea.vmem %s0, %s147
      %p149 = pneg %p35
      %p150 = pneg %p32
      %p151 = pneg %p56
      %p152 = pneg %p53
      %p153 = pneg %p77
      %p154 = pneg %p74
      %p155 = pneg %p103
      %p156 = pneg %p100
      %s157 = smul.u32 32, %s14
      %p158 = scmp.lt.s32.totalorder %s157, 63
      %s159 = scalar_select %p158, %s157, 63
      %s160 = smul.addr %s159, 8
      %s161 = scalar_lea.vmem %s3, %s160
      %s162 = smul.u32 32, %s14
      %p163 = scmp.lt.s32.totalorder %s162, 63
      %s164 = scalar_select %p163, %s162, 63
      %s165 = smul.addr %s164, 4
      %s166 = scalar_lea.vmem %s0, %s165
      %s167 = smul.u32 32, %s14
      %s168 = smul.u32 32, %s14
      %p169 = scmp.lt.s32.totalorder %s168, 63
      %s170 = scalar_select %p169, %s168, 63
      %s171 = smul.addr %s170, 8
      %s172 = scalar_lea.vmem %s3, %s171
      %s173 = smul.u32 32, %s14
      %v175 = vld [vmem:[%s166] sm:$0xf]
      %v176 = vld [vmem:[%s166 + $0x4] sm:$0xf]
      %v177 = vld [vmem:[%s166 + $0x8] sm:$0xf]
      %v178 = vld [vmem:[%s166 + $0xc] sm:$0xf]
      %v179 = vld [vmem:[%s166 + $0x10] sm:$0xf]
      %v180 = vld [vmem:[%s166 + $0x14] sm:$0xf]
      %v181 = vld [vmem:[%s166 + $0x18] sm:$0xf]
      %v182 = vld [vmem:[%s166 + $0x1c] sm:$0xf]
      %v183 = vld [vmem:[%s166 + $0x20] sm:$0xf]
      %v184 = vld [vmem:[%s166 + $0x24] sm:$0xf]
      %v185 = vld [vmem:[%s166 + $0x28] sm:$0xf]
      %v186 = vld [vmem:[%s166 + $0x2c] sm:$0xf]
      %v187 = vld [vmem:[%s166 + $0x30] sm:$0xf]
      %v188 = vld [vmem:[%s166 + $0x34] sm:$0xf]
      %v189 = vld [vmem:[%s166 + $0x38] sm:$0xf]
      %v190 = vld [vmem:[%s166 + $0x3c] sm:$0xf]
      %v191 = vld [vmem:[%s166 + $0x40] sm:$0xf]
      %v192 = vld [vmem:[%s166 + $0x44] sm:$0xf]
      %v193 = vld [vmem:[%s166 + $0x48] sm:$0xf]
      %v194 = vld [vmem:[%s166 + $0x4c] sm:$0xf]
      %v195 = vld [vmem:[%s166 + $0x50] sm:$0xf]
      %v196 = vld [vmem:[%s166 + $0x54] sm:$0xf]
      %v197 = vld [vmem:[%s166 + $0x58] sm:$0xf]
      %v198 = vld [vmem:[%s166 + $0x5c] sm:$0xf]
      %v199 = vld [vmem:[%s166 + $0x60] sm:$0xf]
      %v200 = vld [vmem:[%s166 + $0x64] sm:$0xf]
      %v201 = vld [vmem:[%s166 + $0x68] sm:$0xf]
      %v202 = vld [vmem:[%s166 + $0x6c] sm:$0xf]
      %v203 = vld [vmem:[%s166 + $0x70] sm:$0xf]
      %v204 = vld [vmem:[%s166 + $0x74] sm:$0xf]
      %v205 = vld [vmem:[%s166 + $0x78] sm:$0xf]
      %v206 = vld [vmem:[%s166 + $0x7c] sm:$0xf]
      %v207 = vld [vmem:[%s1] sm:$0xf]
      %v208 = vld [vmem:[%s1 + $0x4] sm:$0xf]
      %v209 = vld [vmem:[%s1 + $0x8] sm:$0xf]
      %v210 = vld [vmem:[%s1 + $0xc] sm:$0xf]
      %v211 = vld [vmem:[%s1 + $0x10] sm:$0x3]
      %v244 = vunpack.c.l.b16 %v175
      %v245 = vunpack.c.l.b16 %v176
      %v246 = vunpack.c.l.b16 %v177
      %v247 = vunpack.c.l.b16 %v178
      %v248 = vunpack.c.l.b16 %v179
      %v249 = vunpack.c.l.b16 %v180
      %v250 = vunpack.c.l.b16 %v181
      %v251 = vunpack.c.l.b16 %v182
      %v252 = vunpack.c.l.b16 %v183
      %v253 = vunpack.c.l.b16 %v184
      %v254 = vunpack.c.l.b16 %v185
      %v255 = vunpack.c.l.b16 %v186
      %v256 = vunpack.c.l.b16 %v187
      %v257 = vunpack.c.l.b16 %v188
      %v258 = vunpack.c.l.b16 %v189
      %v259 = vunpack.c.l.b16 %v190
      %v260 = vunpack.c.l.b16 %v191
      %v261 = vunpack.c.l.b16 %v192
      %v262 = vunpack.c.l.b16 %v193
      %v263 = vunpack.c.l.b16 %v194
      %v264 = vunpack.c.l.b16 %v195
      %v265 = vunpack.c.l.b16 %v196
      %v266 = vunpack.c.l.b16 %v197
      %v267 = vunpack.c.l.b16 %v198
      %v268 = vunpack.c.l.b16 %v199
      %v269 = vunpack.c.l.b16 %v200
      %v270 = vunpack.c.l.b16 %v201
      %v271 = vunpack.c.l.b16 %v202
      %v272 = vunpack.c.l.b16 %v203
      %v273 = vunpack.c.l.b16 %v204
      %v274 = vunpack.c.l.b16 %v205
      %v275 = vunpack.c.l.b16 %v206
      %v276 = vpack.c.b16 %v245, %v244
      %v277 = vpack.c.b16 %v247, %v246
      %v278 = vpack.c.b16 %v249, %v248
      %v279 = vpack.c.b16 %v251, %v250
      %v280 = vpack.c.b16 %v253, %v252
      %v281 = vpack.c.b16 %v255, %v254
      %v282 = vpack.c.b16 %v257, %v256
      %v283 = vpack.c.b16 %v259, %v258
      %v284 = vpack.c.b16 %v261, %v260
      %v285 = vpack.c.b16 %v263, %v262
      %v286 = vpack.c.b16 %v265, %v264
      %v287 = vpack.c.b16 %v267, %v266
      %v288 = vpack.c.b16 %v269, %v268
      %v289 = vpack.c.b16 %v271, %v270
      %v290 = vpack.c.b16 %v273, %v272
      %v291 = vpack.c.b16 %v275, %v274
      %v297 = vunpack.c.l.b16 %v207
      %v298 = vunpack.c.l.b16 %v208
      %v299 = vunpack.c.l.b16 %v209
      %v300 = vunpack.c.l.b16 %v210
      %v301 = vunpack.c.l.b16 %v211
      %v302 = vpack.c.b16 %v298, %v297
      %v303 = vpack.c.b16 %v300, %v299
      %v304 = vpack.c.b16 %v301, %v301
      %vm307 = vcmask 293888
      %v309 = vsel %vm307, %v276, 0
      %v312 = vsel %vm307, %v277, 0
      %v315 = vsel %vm307, %v278, 0
      %v318 = vsel %vm307, %v279, 0
      %v321 = vsel %vm307, %v280, 0
      %v324 = vsel %vm307, %v281, 0
      %v327 = vsel %vm307, %v282, 0
      %v330 = vsel %vm307, %v283, 0
      %v333 = vsel %vm307, %v284, 0
      %v336 = vsel %vm307, %v285, 0
      %v339 = vsel %vm307, %v286, 0
      %v342 = vsel %vm307, %v287, 0
      %v345 = vsel %vm307, %v288, 0
      %v348 = vsel %vm307, %v289, 0
      %v351 = vsel %vm307, %v290, 0
      %v354 = vsel %vm307, %v291, 0
      %vm356 = vcmask 1041408
      %v358 = vsel %vm356, %v304, 0
      %360 = vmatpush.bf16.msra.mxu0 0
      %361 = vmatpush.bf16.msra.mxu0 0
      %362 = vmatpush.bf16.msra.mxu0 0
      %363 = vmatpush.bf16.msra.mxu0 0
      %364 = vmatpush.bf16.msra.mxu0 0
      %365 = vmatpush.bf16.msra.mxu0 %v358
      %366 = vmatpush.bf16.msra.mxu0 %v303
      %367 = vmatpush.bf16.msra.mxu0 %v302
      %368 = vmatmul.bf16.gmra.mxu0 %v309
      %v369 = vpop.f32.mrf.mxu0
      %v370 = vadd.f32 0.0, %v369
      %v371 = vpop.f32.mrf.mxu0
      %v372 = vadd.f32 0.0, %v371
      %373 = vmatmul.bf16.gmra.mxu0 %v312
      %v374 = vpop.f32.mrf.mxu0
      %v375 = vadd.f32 0.0, %v374
      %v376 = vpop.f32.mrf.mxu0
      %v377 = vadd.f32 0.0, %v376
      %378 = vmatmul.bf16.gmra.mxu0 %v315
      %v379 = vpop.f32.mrf.mxu0
      %v380 = vadd.f32 0.0, %v379
      %v381 = vpop.f32.mrf.mxu0
      %v382 = vadd.f32 0.0, %v381
      %383 = vmatmul.bf16.gmra.mxu0 %v318
      %v384 = vpop.f32.mrf.mxu0
      %v385 = vadd.f32 0.0, %v384
      %v386 = vpop.f32.mrf.mxu0
      %v387 = vadd.f32 0.0, %v386
      %388 = vmatmul.bf16.gmra.mxu0 %v321
      %v389 = vpop.f32.mrf.mxu0
      %v390 = vadd.f32 0.0, %v389
      %v391 = vpop.f32.mrf.mxu0
      %v392 = vadd.f32 0.0, %v391
      %393 = vmatmul.bf16.gmra.mxu0 %v324
      %v394 = vpop.f32.mrf.mxu0
      %v395 = vadd.f32 0.0, %v394
      %v396 = vpop.f32.mrf.mxu0
      %v397 = vadd.f32 0.0, %v396
      %398 = vmatmul.bf16.gmra.mxu0 %v327
      %v399 = vpop.f32.mrf.mxu0
      %v400 = vadd.f32 0.0, %v399
      %v401 = vpop.f32.mrf.mxu0
      %v402 = vadd.f32 0.0, %v401
      %403 = vmatmul.bf16.gmra.mxu0 %v330
      %v404 = vpop.f32.mrf.mxu0
      %v405 = vadd.f32 0.0, %v404
      %v406 = vpop.f32.mrf.mxu0
      %v407 = vadd.f32 0.0, %v406
      %408 = vmatmul.bf16.gmra.mxu0 %v333
      %v409 = vpop.f32.mrf.mxu0
      %v410 = vadd.f32 0.0, %v409
      %v411 = vpop.f32.mrf.mxu0
      %v412 = vadd.f32 0.0, %v411
      %413 = vmatmul.bf16.gmra.mxu0 %v336
      %v414 = vpop.f32.mrf.mxu0
      %v415 = vadd.f32 0.0, %v414
      %v416 = vpop.f32.mrf.mxu0
      %v417 = vadd.f32 0.0, %v416
      %418 = vmatmul.bf16.gmra.mxu0 %v339
      %v419 = vpop.f32.mrf.mxu0
      %v420 = vadd.f32 0.0, %v419
      %v421 = vpop.f32.mrf.mxu0
      %v422 = vadd.f32 0.0, %v421
      %423 = vmatmul.bf16.gmra.mxu0 %v342
      %v424 = vpop.f32.mrf.mxu0
      %v425 = vadd.f32 0.0, %v424
      %v426 = vpop.f32.mrf.mxu0
      %v427 = vadd.f32 0.0, %v426
      %428 = vmatmul.bf16.gmra.mxu0 %v345
      %v429 = vpop.f32.mrf.mxu0
      %v430 = vadd.f32 0.0, %v429
      %v431 = vpop.f32.mrf.mxu0
      %v432 = vadd.f32 0.0, %v431
      %433 = vmatmul.bf16.gmra.mxu0 %v348
      %v434 = vpop.f32.mrf.mxu0
      %v435 = vadd.f32 0.0, %v434
      %v436 = vpop.f32.mrf.mxu0
      %v437 = vadd.f32 0.0, %v436
      %438 = vmatmul.bf16.gmra.mxu0 %v351
      %v439 = vpop.f32.mrf.mxu0
      %v440 = vadd.f32 0.0, %v439
      %v441 = vpop.f32.mrf.mxu0
      %v442 = vadd.f32 0.0, %v441
      %443 = vmatmul.bf16.gmra.mxu0 %v354
      %v444 = vpop.f32.mrf.mxu0
      %v445 = vadd.f32 0.0, %v444
      %v446 = vpop.f32.mrf.mxu0
      %v447 = vadd.f32 0.0, %v446
      %448 = vdwg.mxu0
      %v449 = vld [vmem:[%s2] sm:$0x1]
      %v450 = vld [vmem:[%s2 + $0x1] sm:$0x1]
      %v451 = vperm.slane %v449, 0
      %v452 = vmul.f32 %v370, %v451
      %v453 = vmul.f32 %v372, %v451
      %v454 = vmul.f32 %v375, %v451
      %v455 = vmul.f32 %v377, %v451
      %v456 = vmul.f32 %v380, %v451
      %v457 = vmul.f32 %v382, %v451
      %v458 = vmul.f32 %v385, %v451
      %v459 = vmul.f32 %v387, %v451
      %v460 = vmul.f32 %v390, %v451
      %v461 = vmul.f32 %v392, %v451
      %v462 = vmul.f32 %v395, %v451
      %v463 = vmul.f32 %v397, %v451
      %v464 = vmul.f32 %v400, %v451
      %v465 = vmul.f32 %v402, %v451
      %v466 = vmul.f32 %v405, %v451
      %v467 = vmul.f32 %v407, %v451
      %v468 = vmul.f32 %v410, %v451
      %v469 = vmul.f32 %v412, %v451
      %v470 = vmul.f32 %v415, %v451
      %v471 = vmul.f32 %v417, %v451
      %v472 = vmul.f32 %v420, %v451
      %v473 = vmul.f32 %v422, %v451
      %v474 = vmul.f32 %v425, %v451
      %v475 = vmul.f32 %v427, %v451
      %v476 = vmul.f32 %v430, %v451
      %v477 = vmul.f32 %v432, %v451
      %v478 = vmul.f32 %v435, %v451
      %v479 = vmul.f32 %v437, %v451
      %v480 = vmul.f32 %v440, %v451
      %v481 = vmul.f32 %v442, %v451
      %v482 = vmul.f32 %v445, %v451
      %v483 = vmul.f32 %v447, %v451
      %v484 = vperm.slane %v450, 0
      %v485 = vadd.f32 %v452, %v484
      %v486 = vadd.f32 %v453, %v484
      %v487 = vadd.f32 %v454, %v484
      %v488 = vadd.f32 %v455, %v484
      %v489 = vadd.f32 %v456, %v484
      %v490 = vadd.f32 %v457, %v484
      %v491 = vadd.f32 %v458, %v484
      %v492 = vadd.f32 %v459, %v484
      %v493 = vadd.f32 %v460, %v484
      %v494 = vadd.f32 %v461, %v484
      %v495 = vadd.f32 %v462, %v484
      %v496 = vadd.f32 %v463, %v484
      %v497 = vadd.f32 %v464, %v484
      %v498 = vadd.f32 %v465, %v484
      %v499 = vadd.f32 %v466, %v484
      %v500 = vadd.f32 %v467, %v484
      %v501 = vadd.f32 %v468, %v484
      %v502 = vadd.f32 %v469, %v484
      %v503 = vadd.f32 %v470, %v484
      %v504 = vadd.f32 %v471, %v484
      %v505 = vadd.f32 %v472, %v484
      %v506 = vadd.f32 %v473, %v484
      %v507 = vadd.f32 %v474, %v484
      %v508 = vadd.f32 %v475, %v484
      %v509 = vadd.f32 %v476, %v484
      %v510 = vadd.f32 %v477, %v484
      %v511 = vadd.f32 %v478, %v484
      %v512 = vadd.f32 %v479, %v484
      %v513 = vadd.f32 %v480, %v484
      %v514 = vadd.f32 %v481, %v484
      %v515 = vadd.f32 %v482, %v484
      %v516 = vadd.f32 %v483, %v484
      %v517 = vmax.f32 %v485, 0.0
      %v518 = vmax.f32 %v486, 0.0
      %v519 = vmax.f32 %v487, 0.0
      %v520 = vmax.f32 %v488, 0.0
      %v521 = vmax.f32 %v489, 0.0
      %v522 = vmax.f32 %v490, 0.0
      %v523 = vmax.f32 %v491, 0.0
      %v524 = vmax.f32 %v492, 0.0
      %v525 = vmax.f32 %v493, 0.0
      %v526 = vmax.f32 %v494, 0.0
      %v527 = vmax.f32 %v495, 0.0
      %v528 = vmax.f32 %v496, 0.0
      %v529 = vmax.f32 %v497, 0.0
      %v530 = vmax.f32 %v498, 0.0
      %v531 = vmax.f32 %v499, 0.0
      %v532 = vmax.f32 %v500, 0.0
      %v533 = vmax.f32 %v501, 0.0
      %v534 = vmax.f32 %v502, 0.0
      %v535 = vmax.f32 %v503, 0.0
      %v536 = vmax.f32 %v504, 0.0
      %v537 = vmax.f32 %v505, 0.0
      %v538 = vmax.f32 %v506, 0.0
      %v539 = vmax.f32 %v507, 0.0
      %v540 = vmax.f32 %v508, 0.0
      %v541 = vmax.f32 %v509, 0.0
      %v542 = vmax.f32 %v510, 0.0
      %v543 = vmax.f32 %v511, 0.0
      %v544 = vmax.f32 %v512, 0.0
      %v545 = vmax.f32 %v513, 0.0
      %v546 = vmax.f32 %v514, 0.0
      %v547 = vmax.f32 %v515, 0.0
      %v548 = vmax.f32 %v516, 0.0
      %549 = vst [vmem:[%s172] sm:$0xff] %v517
      %550 = vst [vmem:[%s172 + $0x8] sm:$0xff] %v518
      %551 = vst [vmem:[%s172 + $0x10] sm:$0xff] %v519
      %552 = vst [vmem:[%s172 + $0x18] sm:$0xff] %v520
      %553 = vst [vmem:[%s172 + $0x20] sm:$0xff] %v521
      %554 = vst [vmem:[%s172 + $0x28] sm:$0xff] %v522
      %555 = vst [vmem:[%s172 + $0x30] sm:$0xff] %v523
      %556 = vst [vmem:[%s172 + $0x38] sm:$0xff] %v524
      %557 = vst [vmem:[%s172 + $0x40] sm:$0xff] %v525
      %558 = vst [vmem:[%s172 + $0x48] sm:$0xff] %v526
      %559 = vst [vmem:[%s172 + $0x50] sm:$0xff] %v527
      %560 = vst [vmem:[%s172 + $0x58] sm:$0xff] %v528
      %561 = vst [vmem:[%s172 + $0x60] sm:$0xff] %v529
      %562 = vst [vmem:[%s172 + $0x68] sm:$0xff] %v530
      %563 = vst [vmem:[%s172 + $0x70] sm:$0xff] %v531
      %564 = vst [vmem:[%s172 + $0x78] sm:$0xff] %v532
      %565 = vst [vmem:[%s172 + $0x80] sm:$0xff] %v533
      %566 = vst [vmem:[%s172 + $0x88] sm:$0xff] %v534
      %567 = vst [vmem:[%s172 + $0x90] sm:$0xff] %v535
      %568 = vst [vmem:[%s172 + $0x98] sm:$0xff] %v536
      %569 = vst [vmem:[%s172 + $0xa0] sm:$0xff] %v537
      %570 = vst [vmem:[%s172 + $0xa8] sm:$0xff] %v538
      %571 = vst [vmem:[%s172 + $0xb0] sm:$0xff] %v539
      %572 = vst [vmem:[%s172 + $0xb8] sm:$0xff] %v540
      %573 = vst [vmem:[%s172 + $0xc0] sm:$0xff] %v541
      %574 = vst [vmem:[%s172 + $0xc8] sm:$0xff] %v542
      %575 = vst [vmem:[%s172 + $0xd0] sm:$0xff] %v543
      %576 = vst [vmem:[%s172 + $0xd8] sm:$0xff] %v544
      %577 = vst [vmem:[%s172 + $0xe0] sm:$0xff] %v545
      %578 = vst [vmem:[%s172 + $0xe8] sm:$0xff] %v546
      %579 = vst [vmem:[%s172 + $0xf0] sm:$0xff] %v547
      %580 = vst [vmem:[%s172 + $0xf8] sm:$0xff] %v548
      %s581 = smul.u32 32, %s14
      %p582 = scmp.lt.s32.totalorder %s581, 63
      %s583 = scalar_select %p582, %s581, 63
      %s584 = smul.addr %s583, 8
      %s585 = scalar_lea.vmem %s3, %s584
      // Predicated region
      $region33: #{conv_block_forward.3} parent=31 // pred_check
        %p586 = pneg %p100
      $region34: #{conv_block_forward.3} parent=31 // pred_check_branch
        %588 = sbr.rel (%p586) target = $region36
      $region35: #{conv_block_forward.3} parent=31 // pred_region
        %s589 = smul.u32 32, %s14
      $region36: #{conv_block_forward.3} parent=31 // pred_fallthru
        _
    $region32: #{conv_block_forward.3} parent=5 // pred_fallthru
      _
    %p590 = scmp.le.s32.totalorder 2, %s9
    // Predicated region
    $region37: #{conv_block_forward.3} parent=5 // pred_check
      %p591 = pneg %p590
    $region38: #{conv_block_forward.3} parent=5 // pred_check_branch
      %593 = sbr.rel (%p591) target = $region40
    $region39: #{conv_block_forward.3} parent=5 // pred_region
      %s594 = ssub.s32 %s9, 2
      // Predicated region
      $region41: #{conv_block_forward.3} parent=39 // pred_check
        %p595 = pneg %p106
      $region42: #{conv_block_forward.3} parent=39 // pred_check_branch
        %597 = sbr.rel (%p595) target = $region44
      $region43: #{conv_block_forward.3} parent=39 // pred_region
        %s598 = smul.u32 32, %s15
        %p599 = scmp.lt.s32.totalorder %s598, 63
        %s600 = scalar_select %p599, %s598, 63
        %s601 = smul.addr %s600, 8
        %s602 = scalar_lea.vmem %s3, %s601
      $region44: #{conv_block_forward.3} parent=39 // pred_fallthru
        _
    $region40: #{conv_block_forward.3} parent=5 // pred_fallthru
      _
  $region6: #{conv_block_forward.3} parent=0 // loop_footer
    %s13 = sadd.s32 1, %s9
  $region7: #{conv_block_forward.3} parent=0 // loop_footer_branch
    %8 = sbr.rel target = $region3
  $region8: #{conv_block_forward.3} parent=0 // loop_exit
    _

</llo_original>
